<compile_context>
chip_gen: v5e
topology: v5e:2x2
jax: 0.10.0
libtpu: 0.0.40
codegen_flags: <defaults>
</compile_context>

<pallas_src>
import jax
import jax.numpy as jnp
from jax.experimental import pallas as pl
from jax.experimental.pallas import tpu as pltpu


def _lovasz_kernel(err_ref, fg_ref, rem_ref, posb_ref, lane_ref, tri_ref, out_ref):
    err = err_ref[...]                                   # [nT, T] f32, sorted |fg - p|
    fg = fg_ref[...]                                     # [nT, T] bf16, exact 0/1 (sorted fg)

    # Within-tile inclusive cumsum of fg for all nT tiles at once (one MXU matmul).
    local_cum = jnp.dot(fg, tri_ref[...], preferred_element_type=jnp.float32)   # [nT, T]
    fg32 = fg.astype(jnp.float32)

    # Global 1-based sorted position of every element: per-tile base + within-tile lane pos.
    pos1 = posb_ref[...] + lane_ref[...]                 # [nT,1] + [1,T] -> [nT, T]

    # inter = gts - cumsum(fg);   union = gts + cumsum(1 - fg) = inter + pos.
    inter = rem_ref[...] - local_cum                     # [nT,1] - [nT,T] -> [nT, T], >= 0
    union = pos1 + inter                                 # >= 1 always
    union_m1 = jnp.maximum(union + (fg32 - 1.0), 1.0)    # union at position i-1 (floored)

    # Lovasz gradient jac(i) - jac(i-1), collapsed to a single divide:
    grad = (inter + fg32 * pos1) / (union * union_m1)

    part = jnp.sum(err * grad, axis=1, keepdims=True)    # [nT, 1] lane reduce
    out_ref[...] = jnp.sum(part, axis=0, keepdims=True)  # [1, 1] per-(class, block) partial


def lovasz_softmax_pallas(probas, labels, *, tile=256, tiles_per_block=1024):
    """probas: [B, C, H, W] float, labels: [B, H, W] int. Returns scalar f32 loss.

    tile: triangular-matmul width T (use 128 on v5e to match its 4x128x128 MXU,
          256 on v6e/v7x).
    tiles_per_block: tiles per (class, block) grid step.  Bigger blocks amortize the
          ~0.35us/step pipeline overhead; VMEM use is ~12 * tiles_per_block * tile bytes
          (double-buffered err f32 + fg bf16), a few MB at the default -- safe even on
          v7x's 64 MiB VMEM.
    """
    assert tile % 128 == 0
    B, C, H, W = probas.shape
    P = B * H * W

    # Class-major [C, P] views (single transpose of probas; all later steps are pure reshapes).
    probas_cp = jnp.transpose(probas, (1, 0, 2, 3)).reshape(C, P).astype(jnp.float32)
    labels_flat = labels.reshape(P)
    fg = (labels_flat[None, :] ==
          jnp.arange(C, dtype=labels_flat.dtype)[:, None]).astype(jnp.float32)       # [C, P]
    errors = jnp.abs(fg - probas_cp)                                                  # [C, P]

    gts = jnp.sum(fg, axis=-1)                          # [C] per-class foreground count
    present = (gts > 0).astype(jnp.float32)

    # TODO(synk): descending sort/argsort has no clean Pallas TPU equivalent; done in JAX glue.
    order = jnp.argsort(-errors, axis=-1)
    errors_sorted = jnp.take_along_axis(errors, order, axis=-1)
    fg_sorted = jnp.take_along_axis(fg, order, axis=-1)

    # ---- tiling ---------------------------------------------------------------
    T = tile if P >= tile else 128
    need = -(-P // T)                                   # tiles needed to cover P (per class)
    nT = min(tiles_per_block, need)
    nT = max(16, (nT // 16) * 16)                       # multiple of 16 (bf16 sublane tiling)
    BLK = nT * T
    nblk = -(-P // BLK)
    P_pad = nblk * BLK
    n_tiles = nblk * nT
    pad = P_pad - P

    err_p = jnp.pad(errors_sorted, ((0, 0), (0, pad)))  # padded err = 0 -> zero contribution
    fg_p = jnp.pad(fg_sorted, ((0, 0), (0, pad)))       # padded fg  = 0

    # Per-tile exclusive fg prefix -> rem = gts - (fg count before this tile), [C, n_tiles].
    tile_sums = jnp.sum(fg_p.reshape(C, n_tiles, T), axis=-1)
    rem = gts[:, None] - (jnp.cumsum(tile_sums, axis=-1) - tile_sums)

    # Pure reshapes (no HBM transpose): row r = c*n_tiles + g holds tile g of class c.
    err_r = err_p.reshape(C * n_tiles, T)                              # f32
    fg_r = fg_p.reshape(C * n_tiles, T).astype(jnp.bfloat16)           # exact 0/1, half the DMA
    rem_r = rem.reshape(C * n_tiles, 1)                                # f32

    # Tile base positions (class independent) and within-tile 1-based lane positions.
    posb = (jnp.arange(n_tiles, dtype=jnp.float32) * T).reshape(n_tiles, 1)
    lane_pos = (jnp.arange(T, dtype=jnp.float32) + 1.0).reshape(1, T)
    # Triangular cumsum operand: tri[j, i] = 1 if j <= i (bf16 exact).
    tri = (jnp.arange(T)[:, None] <= jnp.arange(T)[None, :]).astype(jnp.bfloat16)

    part = pl.pallas_call(
        _lovasz_kernel,
        out_shape=jax.ShapeDtypeStruct((C, nblk, 1, 1), jnp.float32),
        grid=(C, nblk),
        in_specs=[
            pl.BlockSpec((nT, T), lambda c, b: (c * nblk + b, 0)),   # err
            pl.BlockSpec((nT, T), lambda c, b: (c * nblk + b, 0)),   # fg
            pl.BlockSpec((nT, 1), lambda c, b: (c * nblk + b, 0)),   # rem (per-tile carry)
            pl.BlockSpec((nT, 1), lambda c, b: (b, 0)),              # posb (per-tile base pos)
            pl.BlockSpec((1, T), lambda c, b: (0, 0)),               # lane_pos (resident)
            pl.BlockSpec((T, T), lambda c, b: (0, 0)),               # tri (resident)
        ],
        out_specs=pl.BlockSpec((None, None, 1, 1), lambda c, b: (c, b, 0, 0)),
        compiler_params=pltpu.CompilerParams(
            # No cross-step state -> both axes parallel (megacore sharding on v7x).
            dimension_semantics=("parallel", "parallel"),
            vmem_limit_bytes=32 * 1024 * 1024,
        ),
    )(err_r, fg_r, rem_r, posb, lane_pos, tri)

    per_class = jnp.sum(part, axis=(1, 2, 3))            # [C] per-class err . lovasz_grad
    num = jnp.sum(per_class * present)
    den = jnp.sum(present)
    return jnp.where(den > 0, num / jnp.maximum(den, 1.0), jnp.float32(0.0))


class LovaszSoftmaxPallas:
    """Mirrors Lovasz_softmax(classes='present', per_image=False, ignore=None)."""

    def __init__(self, classes="present", per_image=False, ignore=None):
        assert classes == "present" and not per_image and ignore is None, \
            "only the default configuration is implemented"

    def __call__(self, probas, labels):
        return lovasz_softmax_pallas(probas, labels)


def _reference(probas, labels):
    """Pure-JAX replica of the PyTorch forward for verification."""
    B, C, H, W = probas.shape
    probas_flat = jnp.transpose(probas, (0, 2, 3, 1)).reshape(-1, C).astype(jnp.float32)
    labels_flat = labels.reshape(-1)
    losses, present = [], []
    for c in range(C):
        fgc = (labels_flat == c).astype(jnp.float32)
        err = jnp.abs(fgc - probas_flat[:, c])
        order = jnp.argsort(-err)
        es, fs = err[order], fgc[order]
        gts = fs.sum()
        inter = gts - jnp.cumsum(fs)
        union = gts + jnp.cumsum(1.0 - fs)
        jac = 1.0 - inter / union
        grad = jnp.concatenate([jac[:1], jac[1:] - jac[:-1]])
        losses.append(jnp.dot(es, grad))
        present.append(gts > 0)
    losses = jnp.stack(losses)
    present = jnp.stack(present).astype(jnp.float32)
    return jnp.sum(losses * present) / jnp.maximum(jnp.sum(present), 1.0)


if __name__ == "__main__":
    key = jax.random.PRNGKey(0)
    k1, k2 = jax.random.split(key)
    B, C, H, W = 2, 4, 16, 16

    logits = jax.random.normal(k1, (B, C, H, W), dtype=jnp.float32)
    probas = jax.nn.softmax(logits, axis=1)               # [B, C, H, W], NCHW
    labels = jax.random.randint(k2, (B, H, W), 0, C, dtype=jnp.int32)

    loss_fn = LovaszSoftmaxPallas()
    loss = jax.block_until_ready(loss_fn(probas, labels))

    ref = jax.block_until_ready(_reference(probas, labels))
    assert jnp.allclose(loss, ref, rtol=1e-5, atol=1e-5), (loss, ref)

    print("KERNEL_OK")
</pallas_src>

<mosaic_0001>
module attributes {stable_mosaic.version = 11 : i64} {
  func.func @_lovasz_kernel(%arg0: i32, %arg1: i32, %arg2: memref<16x256xf32, #tpu.memory_space<vmem>>, %arg3: memref<16x256xbf16, #tpu.memory_space<vmem>>, %arg4: memref<16x1xf32, #tpu.memory_space<vmem>>, %arg5: memref<16x1xf32, #tpu.memory_space<vmem>>, %arg6: memref<1x256xf32, #tpu.memory_space<vmem>>, %arg7: memref<256x256xbf16, #tpu.memory_space<vmem>>, %arg8: memref<1x1x1x1xf32, #tpu.memory_space<vmem>>) attributes {dimension_semantics = [#tpu.dimension_semantics<parallel>, #tpu.dimension_semantics<parallel>], iteration_bounds = array<i64: 4, 1>, scalar_prefetch = 0 : i64, scratch_operands = 0 : i64, tpu.core_type = #tpu.core_type<tc>, window_params = [{transform_indices = @transform_0, window_bounds = array<i64: 16, 256>}, {transform_indices = @transform_1, window_bounds = array<i64: 16, 256>}, {transform_indices = @transform_2, window_bounds = array<i64: 16, 1>}, {transform_indices = @transform_3, window_bounds = array<i64: 16, 1>}, {pipeline_mode = #tpu.pipeline_mode<synchronous>, transform_indices = @transform_4, window_bounds = array<i64: 1, 256>}, {pipeline_mode = #tpu.pipeline_mode<synchronous>, transform_indices = @transform_5, window_bounds = array<i64: 256, 256>}, {transform_indices = @transform_6, window_bounds = array<i64: 1, 1, 1, 1>}]} {
    %c0 = arith.constant 0 : index
    %c0_0 = arith.constant 0 : index
    %0 = vector.load %arg2[%c0, %c0_0] : memref<16x256xf32, #tpu.memory_space<vmem>>, vector<16x256xf32>
    %c0_1 = arith.constant 0 : index
    %c0_2 = arith.constant 0 : index
    %1 = vector.load %arg3[%c0_1, %c0_2] : memref<16x256xbf16, #tpu.memory_space<vmem>>, vector<16x256xbf16>
    %c0_3 = arith.constant 0 : index
    %c0_4 = arith.constant 0 : index
    %2 = vector.load %arg7[%c0_3, %c0_4] : memref<256x256xbf16, #tpu.memory_space<vmem>>, vector<256x256xbf16>
    %cst = arith.constant dense<0.000000e+00> : vector<16x256xf32>
    %3 = tpu.matmul %1, %2, %cst {dimension_numbers = #tpu.dot_dimension_numbers<[1], [0], [0], [1], [0, 0, 1, 1], [], []>} : vector<16x256xbf16>, vector<256x256xbf16>, vector<16x256xf32> -> vector<16x256xf32>
    %4 = arith.extf %1 : vector<16x256xbf16> to vector<16x256xf32>
    %c0_5 = arith.constant 0 : index
    %c0_6 = arith.constant 0 : index
    %5 = vector.load %arg5[%c0_5, %c0_6] : memref<16x1xf32, #tpu.memory_space<vmem>>, vector<16x1xf32>
    %c0_7 = arith.constant 0 : index
    %c0_8 = arith.constant 0 : index
    %6 = vector.load %arg6[%c0_7, %c0_8] : memref<1x256xf32, #tpu.memory_space<vmem>>, vector<1x256xf32>
    %7 = vector.broadcast %5 : vector<16x1xf32> to vector<16x256xf32>
    %8 = vector.broadcast %6 : vector<1x256xf32> to vector<16x256xf32>
    %9 = arith.addf %7, %8 : vector<16x256xf32>
    %c0_9 = arith.constant 0 : index
    %c0_10 = arith.constant 0 : index
    %10 = vector.load %arg4[%c0_9, %c0_10] : memref<16x1xf32, #tpu.memory_space<vmem>>, vector<16x1xf32>
    %11 = vector.broadcast %10 : vector<16x1xf32> to vector<16x256xf32>
    %12 = arith.subf %11, %3 : vector<16x256xf32>
    %13 = arith.addf %9, %12 : vector<16x256xf32>
    %cst_11 = arith.constant 1.000000e+00 : f32
    %14 = vector.broadcast %cst_11 : f32 to vector<16x256xf32>
    %15 = arith.subf %4, %14 : vector<16x256xf32>
    %16 = arith.addf %13, %15 : vector<16x256xf32>
    %cst_12 = arith.constant 1.000000e+00 : f32
    %17 = vector.broadcast %cst_12 : f32 to vector<16x256xf32>
    %18 = arith.maximumf %16, %17 : vector<16x256xf32>
    %19 = arith.mulf %4, %9 : vector<16x256xf32>
    %20 = arith.addf %12, %19 : vector<16x256xf32>
    %21 = arith.mulf %13, %18 : vector<16x256xf32>
    %22 = arith.divf %20, %21 : vector<16x256xf32>
    %23 = arith.mulf %0, %22 : vector<16x256xf32>
    %cst_13 = arith.constant dense<0.000000e+00> : vector<16xf32>
    %24 = vector.multi_reduction <add>, %23, %cst_13 [1] : vector<16x256xf32> to vector<16xf32>
    %25 = vector.shape_cast %24 : vector<16xf32> to vector<16x1xf32>
    %cst_14 = arith.constant dense<0.000000e+00> : vector<1xf32>
    %26 = vector.multi_reduction <add>, %25, %cst_14 [0] : vector<16x1xf32> to vector<1xf32>
    %27 = vector.shape_cast %26 : vector<1xf32> to vector<1x1xf32>
    %c0_15 = arith.constant 0 : index
    %c0_16 = arith.constant 0 : index
    %c0_17 = arith.constant 0 : index
    %c0_18 = arith.constant 0 : index
    %28 = vector.load %arg8[%c0_15, %c0_16, %c0_17, %c0_18] : memref<1x1x1x1xf32, #tpu.memory_space<vmem>>, vector<1x1x1x1xf32>
    %29 = vector.shape_cast %28 : vector<1x1x1x1xf32> to vector<1x1xf32>
    %30 = vector.shape_cast %27 : vector<1x1xf32> to vector<1x1x1x1xf32>
    tpu.vector_store %arg8[%c0_15, %c0_16, %c0_17, %c0_18], %30 {strides = array<i32>} : memref<1x1x1x1xf32, #tpu.memory_space<vmem>>, vector<1x1x1x1xf32>,
    return
  }
  func.func @transform_0(%arg0: i32, %arg1: i32) -> (i32, i32) {
    %c1_i32 = arith.constant 1 : i32
    %0 = arith.muli %arg0, %c1_i32 : i32
    %1 = arith.addi %0, %arg1 : i32
    %c0_i32 = arith.constant 0 : i32
    %c0_i32_0 = arith.constant 0 : i32
    return %1, %c0_i32 : i32, i32
  }
  func.func @transform_1(%arg0: i32, %arg1: i32) -> (i32, i32) {
    %c1_i32 = arith.constant 1 : i32
    %0 = arith.muli %arg0, %c1_i32 : i32
    %1 = arith.addi %0, %arg1 : i32
    %c0_i32 = arith.constant 0 : i32
    %c0_i32_0 = arith.constant 0 : i32
    return %1, %c0_i32 : i32, i32
  }
  func.func @transform_2(%arg0: i32, %arg1: i32) -> (i32, i32) {
    %c1_i32 = arith.constant 1 : i32
    %0 = arith.muli %arg0, %c1_i32 : i32
    %1 = arith.addi %0, %arg1 : i32
    %c0_i32 = arith.constant 0 : i32
    %c0_i32_0 = arith.constant 0 : i32
    return %1, %c0_i32 : i32, i32
  }
  func.func @transform_3(%arg0: i32, %arg1: i32) -> (i32, i32) {
    %c0_i32 = arith.constant 0 : i32
    %c0_i32_0 = arith.constant 0 : i32
    return %arg1, %c0_i32 : i32, i32
  }
  func.func @transform_4(%arg0: i32, %arg1: i32) -> (i32, i32) {
    %c0_i32 = arith.constant 0 : i32
    %c0_i32_0 = arith.constant 0 : i32
    %c0_i32_1 = arith.constant 0 : i32
    return %c0_i32, %c0_i32_0 : i32, i32
  }
  func.func @transform_5(%arg0: i32, %arg1: i32) -> (i32, i32) {
    %c0_i32 = arith.constant 0 : i32
    %c0_i32_0 = arith.constant 0 : i32
    %c0_i32_1 = arith.constant 0 : i32
    return %c0_i32, %c0_i32_0 : i32, i32
  }
  func.func @transform_6(%arg0: i32, %arg1: i32) -> (i32, i32, i32, i32) {
    %c0_i32 = arith.constant 0 : i32
    %c0_i32_0 = arith.constant 0 : i32
    %c0_i32_1 = arith.constant 0 : i32
    return %arg0, %arg1, %c0_i32, %c0_i32_0 : i32, i32, i32, i32
  }
}

</mosaic_0001>

<llo_original>
// kernel: tpu_custom_call.1
$region0: #{tpu_custom_call.1}
  #allocation0 [shape = 'u32[]', space=smem, size = 0x4, offset = 0x4, fixed_abs, tag = 'smem constant byte address 0x4 - core index']
  #allocation1 [shape = 'u32[72,128]{1,0:T(1,128)}', space=vmem, size = 0x9000, scoped, tag = 'internal scratch']
  %s0 = inlined_call_operand.hbm [shape: f32[64,256], index: 0, kind: input, shape index: {}]
  %s1 = inlined_call_operand.vmem [shape: bf16[64,256], index: 1, kind: input, shape index: {}]
  %s2 = inlined_call_operand.vmem [shape: f32[64,1], index: 2, kind: input, shape index: {}]
  %s3 = inlined_call_operand.vmem [shape: f32[16,1], index: 3, kind: input, shape index: {}]
  %s4 = inlined_call_operand.vmem [shape: f32[1,256], index: 4, kind: input, shape index: {}]
  %s5 = inlined_call_operand.hbm [shape: bf16[256,256], index: 5, kind: input, shape index: {}]
  %s6 = inlined_call_operand.vmem [shape: f32[4,1,1,1], index: 6, kind: output, shape index: {}]
  %s7 = sld [smem:[#allocation0]]
  $region65: #{tpu_custom_call.1} parent=0
    _
  %s9 = ssub.s32 1, %s7
  %s10 = scalar_select 0, %s9, %s7
  $region1: #{tpu_custom_call.1} parent=0
    #allocation2 [shape = 'u8[32768]{0}', space=vmem, size = 0x8000, scoped, tag = 'input window, operand 0']
    #allocation3 [shape = 's32[2]{0}', space=sflag, size = 0x8, scoped, tag = 'scoped memory for tpu_custom_call.1']
    #allocation4 [shape = 'u8[131072]{0}', space=vmem, size = 0x20000, scoped, tag = 'input window, operand 5, single buffered']
    #allocation5 [shape = 's32[1]{0}', space=sflag, size = 0x4, scoped, tag = 'scoped memory for tpu_custom_call.1']
    %11 = vsyncpa [#allocation3], 0
    %s12 = scalar_lea.sflag [#allocation3], 1
    %13 = vsyncpa %s12, 0
    %14 = vsyncpa [#allocation5], 0
    loop: start=0, step=1, limit=6
    $region2: #{tpu_custom_call.1} parent=1 // loop_pre_header
      _
    $region3: #{tpu_custom_call.1} parent=1 // loop_header
      %s16 = sphi 0, %s20
      %p17 = scmp.ge.s32.totalorder %s16, 6
      %s23 = sphi 0, %s35
      %s24 = sphi 0, %s31
      %s25 = sphi 0, %s23
      %s26 = sphi 0, %s24
      %s27 = sphi 0, %s25
      %s28 = sphi 0, %s26
      %s40 = sphi 0, %s42
      %s43 = sphi 0, %s40
      %s44 = sphi 0, %s43
      %s60 = sphi 0, %s44
      %s68 = sphi 0, %s70
      %s71 = sphi 0, %s68
      %s72 = sphi 0, %s71
      %s88 = sphi 0, %s72
      %s96 = sphi 0, %s98
      %s99 = sphi 0, %s96
      %s100 = sphi 0, %s99
      %s116 = sphi 0, %s100
      %s122 = sphi 0, %s124
      %s125 = sphi 0, %s122
      %s126 = sphi 0, %s125
      %s142 = sphi 0, %s126
      %s146 = sphi 0, %s146
      %s148 = sphi 0, %s146
      %s149 = sphi 0, %s148
      %s163 = sphi 0, %s149
      %s167 = sphi 0, %s167
      %s169 = sphi 0, %s167
      %s170 = sphi 0, %s169
      %s184 = sphi 0, %s170
      %s192 = sphi 0, %s194
      %s195 = sphi 0, %s192
      %s196 = sphi 0, %s195
      %s212 = sphi 0, %s196
    $region4: #{tpu_custom_call.1} parent=1 // loop_header_branch
      %19 = sbr.rel (%p17) target = $region8
    $region5: #{tpu_custom_call.1} parent=1 // loop_body
      %s21 = ssub.s32 %s16, 1
      %s22 = ssub.s32 %s16, 2
      %s29 = sadd.s32 1, %s24
      %p30 = scmp.ge.s32.totalorder %s29, 1
      %s31 = scalar_select %p30, 0, %s29
      %s32 = sadd.s32 1, %s23
      %s33 = scalar_select %p30, %s32, %s23
      %p34 = scmp.ge.s32.totalorder %s33, 4
      %s35 = scalar_select %p34, 0, %s33
      %s36 = sadd.s32 %s23, %s24
      %s37 = sadd.s32 %s35, %s31
      %s38 = ssub.s32 %s36, %s37
      %p39 = scmp.eq.s32.totalorder %s38, 0
      %s41 = sadd.s32 %s40, 1
      %s42 = scalar_select %p39, %s40, %s41
      %p45 = pneg %p39
      %p46 = scmp.eq.s32.totalorder %s16, 3
      %p47 = por %p45, %p46
      %p48 = scmp.ne.s32.totalorder %s40, %s43
      %p49 = scmp.eq.s32.totalorder %s16, 0
      %p50 = por %p48, %p49
      %p51 = scmp.ne.s32.totalorder %s40, %s43
      %p52 = scmp.eq.s32.totalorder %s21, 3
      %p53 = por %p51, %p52
      %p54 = scmp.ne.s32.totalorder %s43, %s44
      %p55 = scmp.eq.s32.totalorder %s21, 0
      %p56 = por %p54, %p55
      %p57 = scmp.ne.s32.totalorder %s43, %s44
      %p58 = scmp.eq.s32.totalorder %s22, 3
      %p59 = por %p57, %p58
      %p61 = scmp.ne.s32.totalorder %s44, %s60
      %p62 = scmp.eq.s32.totalorder %s22, 0
      %p63 = por %p61, %p62
      %s64 = sadd.s32 %s23, %s24
      %s65 = sadd.s32 %s35, %s31
      %s66 = ssub.s32 %s64, %s65
      %p67 = scmp.eq.s32.totalorder %s66, 0
      %s69 = sadd.s32 %s68, 1
      %s70 = scalar_select %p67, %s68, %s69
      %p73 = pneg %p67
      %p74 = scmp.eq.s32.totalorder %s16, 3
      %p75 = por %p73, %p74
      %p76 = scmp.ne.s32.totalorder %s68, %s71
      %p77 = scmp.eq.s32.totalorder %s16, 0
      %p78 = por %p76, %p77
      %p79 = scmp.ne.s32.totalorder %s68, %s71
      %p80 = scmp.eq.s32.totalorder %s21, 3
      %p81 = por %p79, %p80
      %p82 = scmp.ne.s32.totalorder %s71, %s72
      %p83 = scmp.eq.s32.totalorder %s21, 0
      %p84 = por %p82, %p83
      %p85 = scmp.ne.s32.totalorder %s71, %s72
      %p86 = scmp.eq.s32.totalorder %s22, 3
      %p87 = por %p85, %p86
      %p89 = scmp.ne.s32.totalorder %s72, %s88
      %p90 = scmp.eq.s32.totalorder %s22, 0
      %p91 = por %p89, %p90
      %s92 = sadd.s32 %s23, %s24
      %s93 = sadd.s32 %s35, %s31
      %s94 = ssub.s32 %s92, %s93
      %p95 = scmp.eq.s32.totalorder %s94, 0
      %s97 = sadd.s32 %s96, 1
      %s98 = scalar_select %p95, %s96, %s97
      %p101 = pneg %p95
      %p102 = scmp.eq.s32.totalorder %s16, 3
      %p103 = por %p101, %p102
      %p104 = scmp.ne.s32.totalorder %s96, %s99
      %p105 = scmp.eq.s32.totalorder %s16, 0
      %p106 = por %p104, %p105
      %p107 = scmp.ne.s32.totalorder %s96, %s99
      %p108 = scmp.eq.s32.totalorder %s21, 3
      %p109 = por %p107, %p108
      %p110 = scmp.ne.s32.totalorder %s99, %s100
      %p111 = scmp.eq.s32.totalorder %s21, 0
      %p112 = por %p110, %p111
      %p113 = scmp.ne.s32.totalorder %s99, %s100
      %p114 = scmp.eq.s32.totalorder %s22, 3
      %p115 = por %p113, %p114
      %p117 = scmp.ne.s32.totalorder %s100, %s116
      %p118 = scmp.eq.s32.totalorder %s22, 0
      %p119 = por %p117, %p118
      %s120 = ssub.s32 %s24, %s31
      %p121 = scmp.eq.s32.totalorder %s120, 0
      %s123 = sadd.s32 %s122, 1
      %s124 = scalar_select %p121, %s122, %s123
      %p127 = pneg %p121
      %p128 = scmp.eq.s32.totalorder %s16, 3
      %p129 = por %p127, %p128
      %p130 = scmp.ne.s32.totalorder %s122, %s125
      %p131 = scmp.eq.s32.totalorder %s16, 0
      %p132 = por %p130, %p131
      %p133 = scmp.ne.s32.totalorder %s122, %s125
      %p134 = scmp.eq.s32.totalorder %s21, 3
      %p135 = por %p133, %p134
      %p136 = scmp.ne.s32.totalorder %s125, %s126
      %p137 = scmp.eq.s32.totalorder %s21, 0
      %p138 = por %p136, %p137
      %p139 = scmp.ne.s32.totalorder %s125, %s126
      %p140 = scmp.eq.s32.totalorder %s22, 3
      %p141 = por %p139, %p140
      %p143 = scmp.ne.s32.totalorder %s126, %s142
      %p144 = scmp.eq.s32.totalorder %s22, 0
      %p145 = por %p143, %p144
      %s147 = sadd.s32 %s146, 1
      %p150 = scmp.eq.s32.totalorder %s16, 3
      %p151 = scmp.ne.s32.totalorder %s146, %s148
      %p152 = scmp.eq.s32.totalorder %s16, 0
      %p153 = por %p151, %p152
      %p154 = scmp.ne.s32.totalorder %s146, %s148
      %p155 = scmp.eq.s32.totalorder %s21, 3
      %p156 = por %p154, %p155
      %p157 = scmp.ne.s32.totalorder %s148, %s149
      %p158 = scmp.eq.s32.totalorder %s21, 0
      %p159 = por %p157, %p158
      %p160 = scmp.ne.s32.totalorder %s148, %s149
      %p161 = scmp.eq.s32.totalorder %s22, 3
      %p162 = por %p160, %p161
      %p164 = scmp.ne.s32.totalorder %s149, %s163
      %p165 = scmp.eq.s32.totalorder %s22, 0
      %p166 = por %p164, %p165
      %s168 = sadd.s32 %s167, 1
      %p171 = scmp.eq.s32.totalorder %s16, 3
      %p172 = scmp.ne.s32.totalorder %s167, %s169
      %p173 = scmp.eq.s32.totalorder %s16, 0
      %p174 = por %p172, %p173
      %p175 = scmp.ne.s32.totalorder %s167, %s169
      %p176 = scmp.eq.s32.totalorder %s21, 3
      %p177 = por %p175, %p176
      %p178 = scmp.ne.s32.totalorder %s169, %s170
      %p179 = scmp.eq.s32.totalorder %s21, 0
      %p180 = por %p178, %p179
      %p181 = scmp.ne.s32.totalorder %s169, %s170
      %p182 = scmp.eq.s32.totalorder %s22, 3
      %p183 = por %p181, %p182
      %p185 = scmp.ne.s32.totalorder %s170, %s184
      %p186 = scmp.eq.s32.totalorder %s22, 0
      %p187 = por %p185, %p186
      %s188 = ssub.s32 %s23, %s35
      %s189 = ssub.s32 %s24, %s31
      %s190 = sor.u32 %s188, %s189
      %p191 = scmp.eq.s32.totalorder %s190, 0
      %s193 = sadd.s32 %s192, 1
      %s194 = scalar_select %p191, %s192, %s193
      %p197 = pneg %p191
      %p198 = scmp.eq.s32.totalorder %s16, 3
      %p199 = por %p197, %p198
      %p200 = scmp.ne.s32.totalorder %s192, %s195
      %p201 = scmp.eq.s32.totalorder %s16, 0
      %p202 = por %p200, %p201
      %p203 = scmp.ne.s32.totalorder %s192, %s195
      %p204 = scmp.eq.s32.totalorder %s21, 3
      %p205 = por %p203, %p204
      %p206 = scmp.ne.s32.totalorder %s195, %s196
      %p207 = scmp.eq.s32.totalorder %s21, 0
      %p208 = por %p206, %p207
      %p209 = scmp.ne.s32.totalorder %s195, %s196
      %p210 = scmp.eq.s32.totalorder %s22, 3
      %p211 = por %p209, %p210
      %p213 = scmp.ne.s32.totalorder %s196, %s212
      %p214 = scmp.eq.s32.totalorder %s22, 0
      %p215 = por %p213, %p214
      %p216 = scmp.le.s32.totalorder 1, %s16
      %p217 = scmp.lt.s32.totalorder %s16, 5
      %p218 = pnand %p216, %p217
      %p219 = pneg %p218
      // Predicated region
      $region9: #{tpu_custom_call.1} parent=5 // pred_check
        _
      $region10: #{tpu_custom_call.1} parent=5 // pred_check_branch
        %221 = sbr.rel (%p218) target = $region12
      $region11: #{tpu_custom_call.1} parent=5 // pred_region
        %s222 = ssub.s32 %s16, 1
        // Predicated region
        $region13: #{tpu_custom_call.1} parent=11 // pred_check
          %p223 = pneg %p138
        $region14: #{tpu_custom_call.1} parent=11 // pred_check_branch
          %225 = sbr.rel (%p223) target = $region16
        $region15: #{tpu_custom_call.1} parent=11 // pred_region
          %s226 = smul.u32 2, %s26
          %p227 = scmp.lt.s32.totalorder %s226, 1
          %s228 = scalar_select %p227, %s226, 1
          %s229 = smul.addr %s228, 8
          %s230 = scalar_lea.vmem %s3, %s229
          %s231 = smul.u32 2, %s26
        $region16: #{tpu_custom_call.1} parent=11 // pred_fallthru
          _
        // Predicated region
        $region17: #{tpu_custom_call.1} parent=11 // pred_check
          %p232 = pneg %p159
        $region18: #{tpu_custom_call.1} parent=11 // pred_check_branch
          %234 = sbr.rel (%p232) target = $region20
        $region19: #{tpu_custom_call.1} parent=11 // pred_region
          _
        $region20: #{tpu_custom_call.1} parent=11 // pred_fallthru
          _
        // Predicated region
        $region21: #{tpu_custom_call.1} parent=11 // pred_check
          %p235 = pneg %p180
        $region22: #{tpu_custom_call.1} parent=11 // pred_check_branch
          %237 = sbr.rel (%p235) target = $region24
        $region23: #{tpu_custom_call.1} parent=11 // pred_region
          %239 = vsyncadd [#allocation5], 0
          %s240 = sshll.u32 %s5, 4
          %s241 = int_to_ptr.hbm [resolvable:$true] %s240
          %s242 = sshll.u32 [#allocation4], 4
          %s243 = int_to_ptr.vmem [resolvable:$true] %s242
          %248 = dma.hbm_to_vmem [thread:$0]  %s241, 4096, %s243, [#allocation5], 128, 128, 8
        $region24: #{tpu_custom_call.1} parent=11 // pred_fallthru
          _
      $region12: #{tpu_custom_call.1} parent=5 // pred_fallthru
        _
      %p249 = scmp.lt.s32.totalorder %s16, 4
      // Predicated region
      $region25: #{tpu_custom_call.1} parent=5 // pred_check
        %p250 = pneg %p249
      $region26: #{tpu_custom_call.1} parent=5 // pred_check_branch
        %252 = sbr.rel (%p250) target = $region28
      $region27: #{tpu_custom_call.1} parent=5 // pred_region
        // Predicated region
        $region29: #{tpu_custom_call.1} parent=27 // pred_check
          %p253 = pneg %p50
        $region30: #{tpu_custom_call.1} parent=27 // pred_check_branch
          %255 = sbr.rel (%p253) target = $region32
        $region31: #{tpu_custom_call.1} parent=27 // pred_region
          %s256 = sand.u32 %s40, 1
          %s257 = scalar_lea.sflag [#allocation3], %s256
          %s258 = sand.u32 %s40, 1
          %s259 = smul.addr %s258, 32
          %s260 = scalar_lea.vmem [#allocation2], %s259
          %s261 = sadd.s32 %s23, %s24
          %s262 = smul.u32 2, %s261
          %264 = vsyncadd %s257, 0
          %s265 = smul.addr %s262, 2
          %s266 = smul.addr %s265, 8
          %s267 = scalar_lea.hbm %s0, %s266
          %s268 = sshll.u32 %s267, 4
          %s269 = int_to_ptr.hbm [resolvable:$true] %s268
          %s270 = sshll.u32 %s260, 4
          %s271 = int_to_ptr.vmem [resolvable:$true] %s270
          %276 = dma.hbm_to_vmem [thread:$0]  %s269, 512, %s271, %s257, 256, 256, 16
        $region32: #{tpu_custom_call.1} parent=27 // pred_fallthru
          _
        // Predicated region
        $region33: #{tpu_custom_call.1} parent=27 // pred_check
          %p277 = pneg %p78
        $region34: #{tpu_custom_call.1} parent=27 // pred_check_branch
          %279 = sbr.rel (%p277) target = $region36
        $region35: #{tpu_custom_call.1} parent=27 // pred_region
          %s280 = sadd.s32 %s23, %s24
          %s281 = smul.u32 2, %s280
          %p282 = scmp.lt.s32.totalorder %s281, 7
          %s283 = scalar_select %p282, %s281, 7
          %s284 = smul.addr %s283, 2
          %s285 = smul.addr %s284, 4
          %s286 = scalar_lea.vmem %s1, %s285
          %s287 = sadd.s32 %s23, %s24
          %s288 = smul.u32 2, %s287
        $region36: #{tpu_custom_call.1} parent=27 // pred_fallthru
          _
        // Predicated region
        $region37: #{tpu_custom_call.1} parent=27 // pred_check
          %p289 = pneg %p106
        $region38: #{tpu_custom_call.1} parent=27 // pred_check_branch
          %291 = sbr.rel (%p289) target = $region40
        $region39: #{tpu_custom_call.1} parent=27 // pred_region
          %s292 = sadd.s32 %s23, %s24
          %s293 = smul.u32 2, %s292
          %p294 = scmp.lt.s32.totalorder %s293, 7
          %s295 = scalar_select %p294, %s293, 7
          %s296 = smul.addr %s295, 8
          %s297 = scalar_lea.vmem %s2, %s296
          %s298 = sadd.s32 %s23, %s24
          %s299 = smul.u32 2, %s298
        $region40: #{tpu_custom_call.1} parent=27 // pred_fallthru
          _
      $region28: #{tpu_custom_call.1} parent=5 // pred_fallthru
        _
      %p300 = scmp.le.s32.totalorder 1, %s16
      %p301 = scmp.lt.s32.totalorder %s16, 5
      %p302 = pnand %p300, %p301
      %p303 = pneg %p302
      // Predicated region
      $region41: #{tpu_custom_call.1} parent=5 // pred_check
        _
      $region42: #{tpu_custom_call.1} parent=5 // pred_check_branch
        %305 = sbr.rel (%p302) target = $region44
      $region43: #{tpu_custom_call.1} parent=5 // pred_region
        %s306 = ssub.s32 %s16, 1
        %s307 = sand.u32 %s43, 1
        %s308 = scalar_lea.sflag [#allocation3], %s307
        %s309 = sand.u32 %s43, 1
        %s310 = smul.addr %s309, 32
        %s311 = scalar_lea.vmem [#allocation2], %s310
        // Predicated region
        $region45: #{tpu_custom_call.1} parent=43 // pred_check
          %p312 = pneg %p56
        $region46: #{tpu_custom_call.1} parent=43 // pred_check_branch
          %314 = sbr.rel (%p312) target = $region48
        $region47: #{tpu_custom_call.1} parent=43 // pred_region
          %316 = dma.done %s308, 512
        $region48: #{tpu_custom_call.1} parent=43 // pred_fallthru
          _
        // Predicated region
        $region49: #{tpu_custom_call.1} parent=43 // pred_check
          %p317 = pneg %p180
        $region50: #{tpu_custom_call.1} parent=43 // pred_check_branch
          %319 = sbr.rel (%p317) target = $region52
        $region51: #{tpu_custom_call.1} parent=43 // pred_region
          %321 = dma.done [#allocation5], 4096
        $region52: #{tpu_custom_call.1} parent=43 // pred_fallthru
          _
        %s322 = sand.u32 %s43, 1
        %s323 = scalar_lea.sflag [#allocation3], %s322
        %s324 = sand.u32 %s43, 1
        %s325 = smul.addr %s324, 32
        %s326 = scalar_lea.vmem [#allocation2], %s325
        %p327 = pneg %p56
        %p328 = pneg %p53
        %s329 = sadd.s32 %s25, %s26
        %s330 = smul.u32 2, %s329
        %p331 = scmp.lt.s32.totalorder %s330, 7
        %s332 = scalar_select %p331, %s330, 7
        %s333 = smul.addr %s332, 2
        %s334 = smul.addr %s333, 4
        %s335 = scalar_lea.vmem %s1, %s334
        %p336 = pneg %p84
        %p337 = pneg %p81
        %s338 = sadd.s32 %s25, %s26
        %s339 = smul.u32 2, %s338
        %p340 = scmp.lt.s32.totalorder %s339, 7
        %s341 = scalar_select %p340, %s339, 7
        %s342 = smul.addr %s341, 8
        %s343 = scalar_lea.vmem %s2, %s342
        %p344 = pneg %p112
        %p345 = pneg %p109
        %s346 = smul.u32 2, %s26
        %p347 = scmp.lt.s32.totalorder %s346, 1
        %s348 = scalar_select %p347, %s346, 1
        %s349 = smul.addr %s348, 8
        %s350 = scalar_lea.vmem %s3, %s349
        %p351 = pneg %p138
        %p352 = pneg %p135
        %p353 = pneg %p159
        %p354 = pneg %p156
        %p355 = pneg %p180
        %p356 = pneg %p177
        %p357 = pneg %p208
        %p358 = pneg %p205
        %p359 = scmp.lt.s32.totalorder %s25, 3
        %s360 = scalar_select %p359, %s25, 3
        %p361 = scmp.lt.s32.totalorder %s26, 0
        %s362 = scalar_select %p361, %s26, 0
        %s363 = sadd.s32 %s362, %s360
        %s364 = scalar_lea.vmem %s6, %s363
        %s365 = sadd.s32 %s25, %s26
        %s366 = smul.u32 2, %s365
        %s367 = sadd.s32 %s25, %s26
        %s368 = smul.u32 2, %s367
        %p369 = scmp.lt.s32.totalorder %s368, 7
        %s370 = scalar_select %p369, %s368, 7
        %s371 = smul.addr %s370, 2
        %s372 = smul.addr %s371, 4
        %s373 = scalar_lea.vmem %s1, %s372
        %s374 = sadd.s32 %s25, %s26
        %s375 = smul.u32 2, %s374
        %s376 = sadd.s32 %s25, %s26
        %s377 = smul.u32 2, %s376
        %p378 = scmp.lt.s32.totalorder %s377, 7
        %s379 = scalar_select %p378, %s377, 7
        %s380 = smul.addr %s379, 8
        %s381 = scalar_lea.vmem %s2, %s380
        %s382 = sadd.s32 %s25, %s26
        %s383 = smul.u32 2, %s382
        %s384 = smul.u32 2, %s26
        %p385 = scmp.lt.s32.totalorder %s384, 1
        %s386 = scalar_select %p385, %s384, 1
        %s387 = smul.addr %s386, 8
        %s388 = scalar_lea.vmem %s3, %s387
        %s389 = smul.u32 2, %s26
        %p390 = scmp.lt.s32.totalorder %s25, 3
        %s391 = scalar_select %p390, %s25, 3
        %p392 = scmp.lt.s32.totalorder %s26, 0
        %s393 = scalar_select %p392, %s26, 0
        %s394 = sadd.s32 %s393, %s391
        %s395 = scalar_lea.vmem %s6, %s394
        %v396 = vld [vmem:[%s311] sm:$0xff]
        %v397 = vld [vmem:[%s311 + $0x8] sm:$0xff]
        %v398 = vld [vmem:[%s311 + $0x10] sm:$0xff]
        %v399 = vld [vmem:[%s311 + $0x18] sm:$0xff]
        %v400 = vld [vmem:[%s373] sm:$0xff]
        %v401 = vld [vmem:[%s373 + $0x8] sm:$0xff]
        %v402 = vld [vmem:[#allocation4] sm:$0xff]
        %v403 = vld [vmem:[#allocation4 + $0x8] sm:$0xff]
        %v404 = vld [vmem:[#allocation4 + $0x10] sm:$0xff]
        %v405 = vld [vmem:[#allocation4 + $0x18] sm:$0xff]
        %v406 = vld [vmem:[#allocation4 + $0x20] sm:$0xff]
        %v407 = vld [vmem:[#allocation4 + $0x28] sm:$0xff]
        %v408 = vld [vmem:[#allocation4 + $0x30] sm:$0xff]
        %v409 = vld [vmem:[#allocation4 + $0x38] sm:$0xff]
        %v410 = vld [vmem:[#allocation4 + $0x40] sm:$0xff]
        %v411 = vld [vmem:[#allocation4 + $0x48] sm:$0xff]
        %v412 = vld [vmem:[#allocation4 + $0x50] sm:$0xff]
        %v413 = vld [vmem:[#allocation4 + $0x58] sm:$0xff]
        %v414 = vld [vmem:[#allocation4 + $0x60] sm:$0xff]
        %v415 = vld [vmem:[#allocation4 + $0x68] sm:$0xff]
        %v416 = vld [vmem:[#allocation4 + $0x70] sm:$0xff]
        %v417 = vld [vmem:[#allocation4 + $0x78] sm:$0xff]
        %v418 = vld [vmem:[#allocation4 + $0x80] sm:$0xff]
        %v419 = vld [vmem:[#allocation4 + $0x88] sm:$0xff]
        %v420 = vld [vmem:[#allocation4 + $0x90] sm:$0xff]
        %v421 = vld [vmem:[#allocation4 + $0x98] sm:$0xff]
        %v422 = vld [vmem:[#allocation4 + $0xa0] sm:$0xff]
        %v423 = vld [vmem:[#allocation4 + $0xa8] sm:$0xff]
        %v424 = vld [vmem:[#allocation4 + $0xb0] sm:$0xff]
        %v425 = vld [vmem:[#allocation4 + $0xb8] sm:$0xff]
        %v426 = vld [vmem:[#allocation4 + $0xc0] sm:$0xff]
        %v427 = vld [vmem:[#allocation4 + $0xc8] sm:$0xff]
        %v428 = vld [vmem:[#allocation4 + $0xd0] sm:$0xff]
        %v429 = vld [vmem:[#allocation4 + $0xd8] sm:$0xff]
        %v430 = vld [vmem:[#allocation4 + $0xe0] sm:$0xff]
        %v431 = vld [vmem:[#allocation4 + $0xe8] sm:$0xff]
        %v432 = vld [vmem:[#allocation4 + $0xf0] sm:$0xff]
        %v433 = vld [vmem:[#allocation4 + $0xf8] sm:$0xff]
        %v436 = vunpack.c.l.b16 %v400
        %v437 = vunpack.c.h.b16 %v400
        %v438 = vunpack.c.l.b16 %v401
        %v439 = vunpack.c.h.b16 %v401
        %v440 = vpack.c.b16 %v438, %v436
        %v441 = vpack.c.b16 %v439, %v437
        %v476 = vunpack.c.l.b16 %v402
        %v477 = vunpack.c.h.b16 %v402
        %v478 = vunpack.c.l.b16 %v403
        %v479 = vunpack.c.h.b16 %v403
        %v480 = vunpack.c.l.b16 %v404
        %v481 = vunpack.c.h.b16 %v404
        %v482 = vunpack.c.l.b16 %v405
        %v483 = vunpack.c.h.b16 %v405
        %v484 = vunpack.c.l.b16 %v406
        %v485 = vunpack.c.h.b16 %v406
        %v486 = vunpack.c.l.b16 %v407
        %v487 = vunpack.c.h.b16 %v407
        %v488 = vunpack.c.l.b16 %v408
        %v489 = vunpack.c.h.b16 %v408
        %v490 = vunpack.c.l.b16 %v409
        %v491 = vunpack.c.h.b16 %v409
        %v492 = vunpack.c.l.b16 %v410
        %v493 = vunpack.c.h.b16 %v410
        %v494 = vunpack.c.l.b16 %v411
        %v495 = vunpack.c.h.b16 %v411
        %v496 = vunpack.c.l.b16 %v412
        %v497 = vunpack.c.h.b16 %v412
        %v498 = vunpack.c.l.b16 %v413
        %v499 = vunpack.c.h.b16 %v413
        %v500 = vunpack.c.l.b16 %v414
        %v501 = vunpack.c.h.b16 %v414
        %v502 = vunpack.c.l.b16 %v415
        %v503 = vunpack.c.h.b16 %v415
        %v504 = vunpack.c.l.b16 %v416
        %v505 = vunpack.c.h.b16 %v416
        %v506 = vunpack.c.l.b16 %v417
        %v507 = vunpack.c.h.b16 %v417
        %v508 = vunpack.c.l.b16 %v418
        %v509 = vunpack.c.h.b16 %v418
        %v510 = vunpack.c.l.b16 %v419
        %v511 = vunpack.c.h.b16 %v419
        %v512 = vunpack.c.l.b16 %v420
        %v513 = vunpack.c.h.b16 %v420
        %v514 = vunpack.c.l.b16 %v421
        %v515 = vunpack.c.h.b16 %v421
        %v516 = vunpack.c.l.b16 %v422
        %v517 = vunpack.c.h.b16 %v422
        %v518 = vunpack.c.l.b16 %v423
        %v519 = vunpack.c.h.b16 %v423
        %v520 = vunpack.c.l.b16 %v424
        %v521 = vunpack.c.h.b16 %v424
        %v522 = vunpack.c.l.b16 %v425
        %v523 = vunpack.c.h.b16 %v425
        %v524 = vunpack.c.l.b16 %v426
        %v525 = vunpack.c.h.b16 %v426
        %v526 = vunpack.c.l.b16 %v427
        %v527 = vunpack.c.h.b16 %v427
        %v528 = vunpack.c.l.b16 %v428
        %v529 = vunpack.c.h.b16 %v428
        %v530 = vunpack.c.l.b16 %v429
        %v531 = vunpack.c.h.b16 %v429
        %v532 = vunpack.c.l.b16 %v430
        %v533 = vunpack.c.h.b16 %v430
        %v534 = vunpack.c.l.b16 %v431
        %v535 = vunpack.c.h.b16 %v431
        %v536 = vunpack.c.l.b16 %v432
        %v537 = vunpack.c.h.b16 %v432
        %v538 = vunpack.c.l.b16 %v433
        %v539 = vunpack.c.h.b16 %v433
        %v540 = vpack.c.b16 %v478, %v476
        %v541 = vpack.c.b16 %v479, %v477
        %v542 = vpack.c.b16 %v482, %v480
        %v543 = vpack.c.b16 %v483, %v481
        %v544 = vpack.c.b16 %v486, %v484
        %v545 = vpack.c.b16 %v487, %v485
        %v546 = vpack.c.b16 %v490, %v488
        %v547 = vpack.c.b16 %v491, %v489
        %v548 = vpack.c.b16 %v494, %v492
        %v549 = vpack.c.b16 %v495, %v493
        %v550 = vpack.c.b16 %v498, %v496
        %v551 = vpack.c.b16 %v499, %v497
        %v552 = vpack.c.b16 %v502, %v500
        %v553 = vpack.c.b16 %v503, %v501
        %v554 = vpack.c.b16 %v506, %v504
        %v555 = vpack.c.b16 %v507, %v505
        %v556 = vpack.c.b16 %v510, %v508
        %v557 = vpack.c.b16 %v511, %v509
        %v558 = vpack.c.b16 %v514, %v512
        %v559 = vpack.c.b16 %v515, %v513
        %v560 = vpack.c.b16 %v518, %v516
        %v561 = vpack.c.b16 %v519, %v517
        %v562 = vpack.c.b16 %v522, %v520
        %v563 = vpack.c.b16 %v523, %v521
        %v564 = vpack.c.b16 %v526, %v524
        %v565 = vpack.c.b16 %v527, %v525
        %v566 = vpack.c.b16 %v530, %v528
        %v567 = vpack.c.b16 %v531, %v529
        %v568 = vpack.c.b16 %v534, %v532
        %v569 = vpack.c.b16 %v535, %v533
        %v570 = vpack.c.b16 %v538, %v536
        %v571 = vpack.c.b16 %v539, %v537
        %604 = vmatpush.bf16.msra.mxu0 %v554
        %605 = vmatpush.bf16.msra.mxu0 %v552
        %606 = vmatpush.bf16.msra.mxu0 %v550
        %607 = vmatpush.bf16.msra.mxu0 %v548
        %608 = vmatpush.bf16.msra.mxu0 %v546
        %609 = vmatpush.bf16.msra.mxu0 %v544
        %610 = vmatpush.bf16.msra.mxu0 %v542
        %611 = vmatpush.bf16.msra.mxu0 %v540
        %612 = vmatmul.bf16.gmra.mxu0 %v440
        %v613 = vpop.f32.mrf.mxu0
        %v614 = vadd.f32 0.0, %v613
        %v615 = vpop.f32.mrf.mxu0
        %v616 = vadd.f32 0.0, %v615
        %617 = vdwg.mxu0
        %618 = vmatpush.bf16.msra.mxu0 %v570
        %619 = vmatpush.bf16.msra.mxu0 %v568
        %620 = vmatpush.bf16.msra.mxu0 %v566
        %621 = vmatpush.bf16.msra.mxu0 %v564
        %622 = vmatpush.bf16.msra.mxu0 %v562
        %623 = vmatpush.bf16.msra.mxu0 %v560
        %624 = vmatpush.bf16.msra.mxu0 %v558
        %625 = vmatpush.bf16.msra.mxu0 %v556
        %626 = vmatmul.bf16.gmra.mxu0 %v441
        %v627 = vpop.f32.mrf.mxu0
        %v628 = vadd.f32 %v614, %v627
        %v629 = vpop.f32.mrf.mxu0
        %v630 = vadd.f32 %v616, %v629
        %631 = vdwg.mxu0
        %632 = vmatpush.bf16.msra.mxu0 %v555
        %633 = vmatpush.bf16.msra.mxu0 %v553
        %634 = vmatpush.bf16.msra.mxu0 %v551
        %635 = vmatpush.bf16.msra.mxu0 %v549
        %636 = vmatpush.bf16.msra.mxu0 %v547
        %637 = vmatpush.bf16.msra.mxu0 %v545
        %638 = vmatpush.bf16.msra.mxu0 %v543
        %639 = vmatpush.bf16.msra.mxu0 %v541
        %640 = vmatmul.bf16.gmra.mxu0 %v440
        %v641 = vpop.f32.mrf.mxu0
        %v642 = vadd.f32 0.0, %v641
        %v643 = vpop.f32.mrf.mxu0
        %v644 = vadd.f32 0.0, %v643
        %645 = vdwg.mxu0
        %646 = vmatpush.bf16.msra.mxu0 %v571
        %647 = vmatpush.bf16.msra.mxu0 %v569
        %648 = vmatpush.bf16.msra.mxu0 %v567
        %649 = vmatpush.bf16.msra.mxu0 %v565
        %650 = vmatpush.bf16.msra.mxu0 %v563
        %651 = vmatpush.bf16.msra.mxu0 %v561
        %652 = vmatpush.bf16.msra.mxu0 %v559
        %653 = vmatpush.bf16.msra.mxu0 %v557
        %654 = vmatmul.bf16.gmra.mxu0 %v441
        %v655 = vpop.f32.mrf.mxu0
        %v656 = vadd.f32 %v642, %v655
        %v657 = vpop.f32.mrf.mxu0
        %v658 = vadd.f32 %v644, %v657
        %659 = vdwg.mxu0
        %v660 = vunpack.c.l.bf16 %v400
        %v661 = vunpack.c.h.bf16 %v400
        %v662 = vunpack.c.l.bf16 %v401
        %v663 = vunpack.c.h.bf16 %v401
        %v664 = vld [vmem:[%s388] sm:$0xff]
        %v665 = vld [vmem:[%s388 + $0x8] sm:$0xff]
        %v666 = vld [vmem:[%s4] sm:$0x3]
        %668 = vset.pattern.permute.xlu0 0
        %669 = vperm.xlu0 %668, %v664
        %v670 = vpop.permute.xlu0 %669
        %673 = vset.pattern.permute.xlu0 0
        %674 = vperm.xlu0 %673, %v665
        %v675 = vpop.permute.xlu0 %674
        %v678 = vperm.slane %v666, 0
        %v679 = vperm.slane %v666, 1
        %v682 = vadd.f32 %v670, %v678
        %v683 = vadd.f32 %v670, %v679
        %v684 = vadd.f32 %v675, %v678
        %v685 = vadd.f32 %v675, %v679
        %v686 = vld [vmem:[%s381] sm:$0xff]
        %v687 = vld [vmem:[%s381 + $0x8] sm:$0xff]
        %689 = vset.pattern.permute.xlu0 0
        %690 = vperm.xlu0 %689, %v686
        %v691 = vpop.permute.xlu0 %690
        %694 = vset.pattern.permute.xlu0 0
        %695 = vperm.xlu0 %694, %v687
        %v696 = vpop.permute.xlu0 %695
        %v698 = vsub.f32 %v691, %v628
        %v699 = vsub.f32 %v691, %v656
        %v700 = vsub.f32 %v696, %v630
        %v701 = vsub.f32 %v696, %v658
        %v702 = vadd.f32 %v682, %v698
        %v703 = vadd.f32 %v683, %v699
        %v704 = vadd.f32 %v684, %v700
        %v705 = vadd.f32 %v685, %v701
        %v706 = vsub.f32 %v660, 1.0
        %v707 = vsub.f32 %v661, 1.0
        %v708 = vsub.f32 %v662, 1.0
        %v709 = vsub.f32 %v663, 1.0
        %v710 = vadd.f32 %v702, %v706
        %v711 = vadd.f32 %v703, %v707
        %v712 = vadd.f32 %v704, %v708
        %v713 = vadd.f32 %v705, %v709
        %v714 = vmax.f32 %v710, 1.0
        %v715 = vmax.f32 %v711, 1.0
        %v716 = vmax.f32 %v712, 1.0
        %v717 = vmax.f32 %v713, 1.0
        %v718 = vmul.f32 %v660, %v682
        %v719 = vmul.f32 %v661, %v683
        %v720 = vmul.f32 %v662, %v684
        %v721 = vmul.f32 %v663, %v685
        %v722 = vadd.f32 %v698, %v718
        %v723 = vadd.f32 %v699, %v719
        %v724 = vadd.f32 %v700, %v720
        %v725 = vadd.f32 %v701, %v721
        %v726 = vmul.f32 %v702, %v714
        %v727 = vmul.f32 %v703, %v715
        %v728 = vmul.f32 %v704, %v716
        %v729 = vmul.f32 %v705, %v717
        %v730 = vrcp.pop %v726
        %v731 = vmul.f32 %v726, %v730
        %v732 = vsub.f32 1.0, %v731
        %v733 = vmul.f32 %v730, %v732
        %v734 = vadd.f32 %v730, %v733
        %vm735 = vweird.f32 %v726
        %vm736 = vweird.f32 %v730
        %vm737 = vmor %vm735, %vm736
        %v738 = vsel %vm737, %v730, %v734
        %v739 = vand.u32 2147483647, %v726
        %vm740 = vcmp.eq.f32.partialorder %v739, 8.507059e+37
        %v741 = vand.u32 %v726, 2147483648
        %v742 = vor.u32 1.1754944e-38, %v741
        %v743 = vsel %vm740, %v742, %v738
        %v744 = vmul.f32 %v722, %v743
        %v745 = vrcp.pop %v727
        %v746 = vmul.f32 %v727, %v745
        %v747 = vsub.f32 1.0, %v746
        %v748 = vmul.f32 %v745, %v747
        %v749 = vadd.f32 %v745, %v748
        %vm750 = vweird.f32 %v727
        %vm751 = vweird.f32 %v745
        %vm752 = vmor %vm750, %vm751
        %v753 = vsel %vm752, %v745, %v749
        %v754 = vand.u32 2147483647, %v727
        %vm755 = vcmp.eq.f32.partialorder %v754, 8.507059e+37
        %v756 = vand.u32 %v727, 2147483648
        %v757 = vor.u32 1.1754944e-38, %v756
        %v758 = vsel %vm755, %v757, %v753
        %v759 = vmul.f32 %v723, %v758
        %v760 = vrcp.pop %v728
        %v761 = vmul.f32 %v728, %v760
        %v762 = vsub.f32 1.0, %v761
        %v763 = vmul.f32 %v760, %v762
        %v764 = vadd.f32 %v760, %v763
        %vm765 = vweird.f32 %v728
        %vm766 = vweird.f32 %v760
        %vm767 = vmor %vm765, %vm766
        %v768 = vsel %vm767, %v760, %v764
        %v769 = vand.u32 2147483647, %v728
        %vm770 = vcmp.eq.f32.partialorder %v769, 8.507059e+37
        %v771 = vand.u32 %v728, 2147483648
        %v772 = vor.u32 1.1754944e-38, %v771
        %v773 = vsel %vm770, %v772, %v768
        %v774 = vmul.f32 %v724, %v773
        %v775 = vrcp.pop %v729
        %v776 = vmul.f32 %v729, %v775
        %v777 = vsub.f32 1.0, %v776
        %v778 = vmul.f32 %v775, %v777
        %v779 = vadd.f32 %v775, %v778
        %vm780 = vweird.f32 %v729
        %vm781 = vweird.f32 %v775
        %vm782 = vmor %vm780, %vm781
        %v783 = vsel %vm782, %v775, %v779
        %v784 = vand.u32 2147483647, %v729
        %vm785 = vcmp.eq.f32.partialorder %v784, 8.507059e+37
        %v786 = vand.u32 %v729, 2147483648
        %v787 = vor.u32 1.1754944e-38, %v786
        %v788 = vsel %vm785, %v787, %v783
        %v789 = vmul.f32 %v725, %v788
        %v790 = vmul.f32 %v396, %v744
        %v791 = vmul.f32 %v397, %v759
        %v792 = vmul.f32 %v398, %v774
        %v793 = vmul.f32 %v399, %v789
        %v794 = vadd.f32 %v790, %v791
        %795 = vadd.xlane.f32.xlu0 %v794
        %v796 = vpop.xlane.xlu0 %795
        %v797 = vadd.f32 %v792, %v793
        %798 = vadd.xlane.f32.xlu0 %v797
        %v799 = vpop.xlane.xlu0 %798
        %v800 = vadd.f32 %v796, %v799
        %v801 = vrot.slane %v800, 4
        %v802 = vadd.f32 %v800, %v801
        %v803 = vrot.slane %v802, 2
        %v804 = vadd.f32 %v802, %v803
        %v805 = vrot.slane %v804, 1
        %v806 = vadd.f32 %v804, %v805
        %vm807 = vcmask 0
        %808 = vst.msk [vmem:[%s395] sm:$0x1] %vm807, %v806
        %p809 = scmp.lt.s32.totalorder %s25, 3
        %s810 = scalar_select %p809, %s25, 3
        %p811 = scmp.lt.s32.totalorder %s26, 0
        %s812 = scalar_select %p811, %s26, 0
        %s813 = sadd.s32 %s812, %s810
        %s814 = scalar_lea.vmem %s6, %s813
        // Predicated region
        $region53: #{tpu_custom_call.1} parent=43 // pred_check
          %p815 = pneg %p205
        $region54: #{tpu_custom_call.1} parent=43 // pred_check_branch
          %817 = sbr.rel (%p815) target = $region56
        $region55: #{tpu_custom_call.1} parent=43 // pred_region
          _
        $region56: #{tpu_custom_call.1} parent=43 // pred_fallthru
          _
      $region44: #{tpu_custom_call.1} parent=5 // pred_fallthru
        _
      %p818 = scmp.le.s32.totalorder 2, %s16
      // Predicated region
      $region57: #{tpu_custom_call.1} parent=5 // pred_check
        %p819 = pneg %p818
      $region58: #{tpu_custom_call.1} parent=5 // pred_check_branch
        %821 = sbr.rel (%p819) target = $region60
      $region59: #{tpu_custom_call.1} parent=5 // pred_region
        %s822 = ssub.s32 %s16, 2
        // Predicated region
        $region61: #{tpu_custom_call.1} parent=59 // pred_check
          %p823 = pneg %p211
        $region62: #{tpu_custom_call.1} parent=59 // pred_check_branch
          %825 = sbr.rel (%p823) target = $region64
        $region63: #{tpu_custom_call.1} parent=59 // pred_region
          %p826 = scmp.lt.s32.totalorder %s27, 3
          %s827 = scalar_select %p826, %s27, 3
          %p828 = scmp.lt.s32.totalorder %s28, 0
          %s829 = scalar_select %p828, %s28, 0
          %s830 = sadd.s32 %s829, %s827
          %s831 = scalar_lea.vmem %s6, %s830
        $region64: #{tpu_custom_call.1} parent=59 // pred_fallthru
          _
      $region60: #{tpu_custom_call.1} parent=5 // pred_fallthru
        _
    $region6: #{tpu_custom_call.1} parent=1 // loop_footer
      %s20 = sadd.s32 1, %s16
    $region7: #{tpu_custom_call.1} parent=1 // loop_footer_branch
      %15 = sbr.rel target = $region3
    $region8: #{tpu_custom_call.1} parent=1 // loop_exit
      _
    %832 = vsyncpa [#allocation3], 1
    %s833 = scalar_lea.sflag [#allocation3], 1
    %834 = vsyncpa %s833, 1
    %835 = vsyncpa [#allocation5], 1

</llo_original>
